<compile_context>
chip_gen: v5e
topology: v5e:2x2
jax: 0.10.0
libtpu: 0.0.40
codegen_flags: <defaults>
</compile_context>

<pallas_src>
import math

import jax
import jax.numpy as jnp
from jax.experimental import pallas as pl
from jax.experimental.pallas import tpu as pltpu


def _sum_kernel(*refs):
    # refs = (x_0, ..., x_{n-1}, out); all blocks (tile_rows, lane)
    x_refs, o_ref = refs[:-1], refs[-1]
    acc = x_refs[0][...]
    for r in x_refs[1:]:
        acc = acc + r[...]
    o_ref[...] = acc.astype(o_ref.dtype)


def _wsum_kernel(w_ref, *refs):
    # w_ref: (n-1,) f32 in SMEM, already sigmoid(w)*2
    x_refs, o_ref = refs[:-1], refs[-1]
    acc = x_refs[0][...]
    for i, r in enumerate(x_refs[1:]):
        acc = acc + r[...] * w_ref[i]
    o_ref[...] = acc.astype(o_ref.dtype)


def _pick_lane(total):
    # Widest lane-dense minor dim (multiple of 128) that divides the flat size.
    for lane in (512, 256, 128):
        if total % lane == 0:
            return lane
    return 128  # will pad


def pallas_sum(xs, w=None):
    """Elementwise (optionally weighted) sum of n same-shape arrays."""
    xs = list(xs)
    n = len(xs)
    shape, dtype = xs[0].shape, xs[0].dtype
    for x in xs[1:]:
        assert x.shape == shape and x.dtype == dtype
    if n == 1:
        return xs[0]

    total = math.prod(shape)
    itemsize = jnp.dtype(dtype).itemsize
    lane = _pick_lane(total)
    rows = pl.cdiv(total, lane)

    # Row-tile: big blocks, but (n inputs + 1 output) * 2 (double buffer) must fit
    # a ~24 MiB budget so v7x's smaller scoped VMEM default is safe too.
    budget_bytes = 24 * 1024 * 1024
    tr_cap = budget_bytes // ((n + 1) * 2 * lane * itemsize)
    tr_cap = max(8, (tr_cap // 8) * 8)  # keep a multiple of 8 (sublane rule)
    if rows <= tr_cap:
        tile_rows = rows                 # single block == full extent (always legal)
        padded_rows = rows
    else:
        tile_rows = min(tr_cap, 8192 * 128 // lane)  # ~4 MiB f32 blocks, multiple of 8
        padded_rows = pl.cdiv(rows, tile_rows) * tile_rows
    padded_total = padded_rows * lane

    def as_slab(x):
        xf = x.reshape(-1)
        if padded_total != total:
            xf = jnp.pad(xf, (0, padded_total - total))
        return xf.reshape(padded_rows, lane)

    slabs = [as_slab(x) for x in xs]
    blk = pl.BlockSpec((tile_rows, lane), lambda i: (i, 0))

    if w is not None:
        # Tiny scalar math in the wrapper; the per-element multiply stays in-kernel.
        wscaled = jax.nn.sigmoid(w.astype(jnp.float32)) * 2.0
        kernel = _wsum_kernel
        in_specs = [pl.BlockSpec(memory_space=pltpu.MemorySpace.SMEM)] + [blk] * n
        args = (wscaled, *slabs)
    else:
        kernel = _sum_kernel
        in_specs = [blk] * n
        args = tuple(slabs)

    out = pl.pallas_call(
        kernel,
        out_shape=jax.ShapeDtypeStruct((padded_rows, lane), dtype),
        grid=(padded_rows // tile_rows,),
        in_specs=in_specs,
        out_specs=blk,
        compiler_params=pltpu.CompilerParams(
            dimension_semantics=("parallel",)),
    )(*args)

    if padded_total != total:
        out = out.reshape(-1)[:total]
    return out.reshape(shape)


class Sum:
    """Mirror of the PyTorch Sum module (forward pass only)."""

    def __init__(self, n, weight=False):
        self.weight = weight
        self.n = n
        if weight:
            self.w = -jnp.arange(1.0, n, dtype=jnp.float32) / 2.0

    def __call__(self, x):
        return pallas_sum(x, self.w if self.weight else None)


def sum_ref(xs, w=None):
    """Pure-JAX reference mirroring the PyTorch module exactly."""
    y = xs[0]
    if w is not None:
        ws = jax.nn.sigmoid(w) * 2.0
        for i in range(len(xs) - 1):
            y = y + xs[i + 1] * ws[i]
    else:
        for i in range(len(xs) - 1):
            y = y + xs[i + 1]
    return y


if __name__ == "__main__":
    key = jax.random.PRNGKey(0)
    n = 3
    N, C, H, W = 2, 4, 16, 16
    keys = jax.random.split(key, n)
    xs = [jax.random.normal(k, (N, C, H, W), dtype=jnp.float32) for k in keys]

    # Unweighted path (module default).
    m = Sum(n, weight=False)
    y = jax.block_until_ready(m(xs))
    ref = sum_ref(xs, None)
    assert y.shape == ref.shape and y.dtype == ref.dtype
    assert jnp.allclose(y, ref, atol=1e-6, rtol=1e-6), "unweighted Sum mismatch"

    # Weighted path.
    mw = Sum(n, weight=True)
    yw = jax.block_until_ready(mw(xs))
    refw = sum_ref(xs, mw.w)
    assert jnp.allclose(yw, refw, atol=1e-5, rtol=1e-5), "weighted Sum mismatch"

    # Odd-sized input (exercises the pad/strip path, still correct).
    xo = [jax.random.normal(k, (3, 5, 7), dtype=jnp.float32) for k in keys]
    yo = jax.block_until_ready(Sum(n, weight=True)(xo))
    refo = sum_ref(xo, mw.w)
    assert jnp.allclose(yo, refo, atol=1e-5, rtol=1e-5), "odd-size Sum mismatch"

    print("KERNEL_OK")
</pallas_src>

<mosaic_0001>
module attributes {stable_mosaic.version = 11 : i64} {
  func.func @_sum_kernel(%arg0: i32, %arg1: memref<4x512xf32, #tpu.memory_space<vmem>>, %arg2: memref<4x512xf32, #tpu.memory_space<vmem>>, %arg3: memref<4x512xf32, #tpu.memory_space<vmem>>, %arg4: memref<4x512xf32, #tpu.memory_space<vmem>>) attributes {dimension_semantics = [#tpu.dimension_semantics<parallel>], iteration_bounds = array<i64: 1>, scalar_prefetch = 0 : i64, scratch_operands = 0 : i64, tpu.core_type = #tpu.core_type<tc>, window_params = [{transform_indices = @transform_0, window_bounds = array<i64: 4, 512>}, {transform_indices = @transform_1, window_bounds = array<i64: 4, 512>}, {transform_indices = @transform_2, window_bounds = array<i64: 4, 512>}, {transform_indices = @transform_3, window_bounds = array<i64: 4, 512>}]} {
    %c0 = arith.constant 0 : index
    %c0_0 = arith.constant 0 : index
    %0 = vector.load %arg1[%c0, %c0_0] : memref<4x512xf32, #tpu.memory_space<vmem>>, vector<4x512xf32>
    %c0_1 = arith.constant 0 : index
    %c0_2 = arith.constant 0 : index
    %1 = vector.load %arg2[%c0_1, %c0_2] : memref<4x512xf32, #tpu.memory_space<vmem>>, vector<4x512xf32>
    %2 = arith.addf %0, %1 : vector<4x512xf32>
    %c0_3 = arith.constant 0 : index
    %c0_4 = arith.constant 0 : index
    %3 = vector.load %arg3[%c0_3, %c0_4] : memref<4x512xf32, #tpu.memory_space<vmem>>, vector<4x512xf32>
    %4 = arith.addf %2, %3 : vector<4x512xf32>
    %c0_5 = arith.constant 0 : index
    %c0_6 = arith.constant 0 : index
    %5 = vector.load %arg4[%c0_5, %c0_6] : memref<4x512xf32, #tpu.memory_space<vmem>>, vector<4x512xf32>
    tpu.vector_store %arg4[%c0_5, %c0_6], %4 {strides = array<i32>} : memref<4x512xf32, #tpu.memory_space<vmem>>, vector<4x512xf32>,
    return
  }
  func.func @transform_0(%arg0: i32) -> (i32, i32) {
    %c0_i32 = arith.constant 0 : i32
    %c0_i32_0 = arith.constant 0 : i32
    return %arg0, %c0_i32 : i32, i32
  }
  func.func @transform_1(%arg0: i32) -> (i32, i32) {
    %c0_i32 = arith.constant 0 : i32
    %c0_i32_0 = arith.constant 0 : i32
    return %arg0, %c0_i32 : i32, i32
  }
  func.func @transform_2(%arg0: i32) -> (i32, i32) {
    %c0_i32 = arith.constant 0 : i32
    %c0_i32_0 = arith.constant 0 : i32
    return %arg0, %c0_i32 : i32, i32
  }
  func.func @transform_3(%arg0: i32) -> (i32, i32) {
    %c0_i32 = arith.constant 0 : i32
    %c0_i32_0 = arith.constant 0 : i32
    return %arg0, %c0_i32 : i32, i32
  }
}

</mosaic_0001>

<llo_original>
// kernel: tpu_custom_call.1
$region0: #{tpu_custom_call.1}
  #allocation0 [shape = 'u32[]', space=smem, size = 0x4, offset = 0x4, fixed_abs, tag = 'smem constant byte address 0x4 - core index']
  #allocation1 [shape = 'u32[72,128]{1,0:T(1,128)}', space=vmem, size = 0x9000, scoped, tag = 'internal scratch']
  %s0 = inlined_call_operand.hbm [shape: f32[4,512], index: 0, kind: input, shape index: {}]
  %s1 = inlined_call_operand.hbm [shape: f32[4,512], index: 1, kind: input, shape index: {}]
  %s2 = inlined_call_operand.hbm [shape: f32[4,512], index: 2, kind: input, shape index: {}]
  %s3 = inlined_call_operand.hbm [shape: f32[4,512], index: 3, kind: output, shape index: {}]
  %s4 = sld [smem:[#allocation0]]
  $region34: #{tpu_custom_call.1} parent=0
    _
  %s6 = ssub.s32 1, %s4
  %s7 = scalar_select 0, %s6, %s4
  $region1: #{tpu_custom_call.1} parent=0
    #allocation2 [shape = 'u8[8192]{0}', space=vmem, size = 0x2000, scoped, tag = 'input window, operand 0, single buffered']
    #allocation3 [shape = 's32[1]{0}', space=sflag, size = 0x4, scoped, tag = 'scoped memory for tpu_custom_call.1']
    #allocation4 [shape = 's32[1]{0}', space=sflag, size = 0x4, scoped, tag = 'scoped memory for tpu_custom_call.1']
    #allocation5 [shape = 'u8[8192]{0}', space=vmem, size = 0x2000, scoped, tag = 'input window, operand 1, single buffered']
    #allocation6 [shape = 's32[1]{0}', space=sflag, size = 0x4, scoped, tag = 'scoped memory for tpu_custom_call.1']
    #allocation7 [shape = 'u8[8192]{0}', space=vmem, size = 0x2000, scoped, tag = 'input window, operand 2, single buffered']
    #allocation8 [shape = 'u8[8192]{0}', space=vmem, size = 0x2000, scoped, tag = 'output window, operand 0, single buffered']
    %8 = vsyncpa [#allocation3], 0
    %9 = vsyncpa [#allocation6], 0
    %10 = vsyncpa [#allocation4], 0
    // Predicated region
    $region2: #{tpu_custom_call.1} parent=1 // pred_check
      _
    $region3: #{tpu_custom_call.1} parent=1 // pred_check_branch
      %12 = sbr.rel (0) target = $region5
    $region4: #{tpu_custom_call.1} parent=1 // pred_region
      %14 = vsyncadd [#allocation3], 0
      %s16 = sshll.u32 %s0, 4
      %s17 = int_to_ptr.hbm [resolvable:$true] %s16
      %s18 = sshll.u32 [#allocation2], 4
      %s19 = int_to_ptr.vmem [resolvable:$true] %s18
      %21 = dma.hbm_to_vmem [thread:$0]  %s17, 256, %s19, [#allocation3]
    $region5: #{tpu_custom_call.1} parent=1 // pred_fallthru
      _
    // Predicated region
    $region6: #{tpu_custom_call.1} parent=1 // pred_check
      _
    $region7: #{tpu_custom_call.1} parent=1 // pred_check_branch
      %23 = sbr.rel (0) target = $region9
    $region8: #{tpu_custom_call.1} parent=1 // pred_region
      %25 = vsyncadd [#allocation6], 0
      %s27 = sshll.u32 %s1, 4
      %s28 = int_to_ptr.hbm [resolvable:$true] %s27
      %s29 = sshll.u32 [#allocation5], 4
      %s30 = int_to_ptr.vmem [resolvable:$true] %s29
      %32 = dma.hbm_to_vmem [thread:$0]  %s28, 256, %s30, [#allocation6]
    $region9: #{tpu_custom_call.1} parent=1 // pred_fallthru
      _
    // Predicated region
    $region10: #{tpu_custom_call.1} parent=1 // pred_check
      _
    $region11: #{tpu_custom_call.1} parent=1 // pred_check_branch
      %34 = sbr.rel (0) target = $region13
    $region12: #{tpu_custom_call.1} parent=1 // pred_region
      %36 = vsyncadd [#allocation6], 0
      %s38 = sshll.u32 %s2, 4
      %s39 = int_to_ptr.hbm [resolvable:$true] %s38
      %s40 = sshll.u32 [#allocation7], 4
      %s41 = int_to_ptr.vmem [resolvable:$true] %s40
      %43 = dma.hbm_to_vmem [thread:$0]  %s39, 256, %s41, [#allocation6]
    $region13: #{tpu_custom_call.1} parent=1 // pred_fallthru
      _
    // Predicated region
    $region14: #{tpu_custom_call.1} parent=1 // pred_check
      _
    $region15: #{tpu_custom_call.1} parent=1 // pred_check_branch
      %45 = sbr.rel (0) target = $region17
    $region16: #{tpu_custom_call.1} parent=1 // pred_region
      %47 = dma.done [#allocation3], 256
    $region17: #{tpu_custom_call.1} parent=1 // pred_fallthru
      _
    // Predicated region
    $region18: #{tpu_custom_call.1} parent=1 // pred_check
      _
    $region19: #{tpu_custom_call.1} parent=1 // pred_check_branch
      %49 = sbr.rel (0) target = $region21
    $region20: #{tpu_custom_call.1} parent=1 // pred_region
      %51 = dma.done [#allocation6], 256
    $region21: #{tpu_custom_call.1} parent=1 // pred_fallthru
      _
    // Predicated region
    $region22: #{tpu_custom_call.1} parent=1 // pred_check
      _
    $region23: #{tpu_custom_call.1} parent=1 // pred_check_branch
      %53 = sbr.rel (0) target = $region25
    $region24: #{tpu_custom_call.1} parent=1 // pred_region
      %55 = dma.done [#allocation6], 256
    $region25: #{tpu_custom_call.1} parent=1 // pred_fallthru
      _
    %v56 = vld [vmem:[#allocation2] sm:$0xff]
    %v57 = vld [vmem:[#allocation2 + $0x8] sm:$0xff]
    %v58 = vld [vmem:[#allocation5] sm:$0xff]
    %v59 = vld [vmem:[#allocation5 + $0x8] sm:$0xff]
    %v60 = vadd.f32 %v56, %v58
    %v61 = vadd.f32 %v57, %v59
    %v62 = vld [vmem:[#allocation7] sm:$0xff]
    %v63 = vld [vmem:[#allocation7 + $0x8] sm:$0xff]
    %v64 = vadd.f32 %v60, %v62
    %v65 = vadd.f32 %v61, %v63
    %66 = vst [vmem:[#allocation8] sm:$0xff] %v64
    %67 = vst [vmem:[#allocation8 + $0x8] sm:$0xff] %v65
    // Predicated region
    $region26: #{tpu_custom_call.1} parent=1 // pred_check
      _
    $region27: #{tpu_custom_call.1} parent=1 // pred_check_branch
      %69 = sbr.rel (0) target = $region29
    $region28: #{tpu_custom_call.1} parent=1 // pred_region
      %71 = vsyncadd [#allocation4], 0
      %s73 = sshll.u32 [#allocation8], 4
      %s74 = int_to_ptr.vmem [resolvable:$true] %s73
      %s75 = sshll.u32 %s3, 4
      %s76 = int_to_ptr.hbm [resolvable:$true] %s75
      %78 = dma.vmem_to_hbm [thread:$0]  %s74, 256, %s76, [#allocation4]
    $region29: #{tpu_custom_call.1} parent=1 // pred_fallthru
      _
    // Predicated region
    $region30: #{tpu_custom_call.1} parent=1 // pred_check
      _
    $region31: #{tpu_custom_call.1} parent=1 // pred_check_branch
      %80 = sbr.rel (0) target = $region33
    $region32: #{tpu_custom_call.1} parent=1 // pred_region
      %82 = dma.done [#allocation4], 256
    $region33: #{tpu_custom_call.1} parent=1 // pred_fallthru
      _
    %83 = vsyncpa [#allocation3], 1
    %84 = vsyncpa [#allocation6], 1
    %85 = vsyncpa [#allocation4], 1

</llo_original>
